<compile_context>
chip_gen: v7x
topology: tpu7x:2x2x1
jax: 0.10.0
libtpu: 0.0.40
codegen_flags: <defaults>
</compile_context>

<pallas_src>
import functools
import math

import jax
import jax.numpy as jnp
from jax.experimental import pallas as pl
from jax.experimental.pallas import tpu as pltpu


# ---------------------------------------------------------------------------
# rem-tag fusion:  y = nodes_h @ W_h + rem_add
# (rem_add = rem_tag_emb @ W_r + b, gathered per token in the wrapper — the
#  K = 2 matmul of the previous version is removed)
# ---------------------------------------------------------------------------
def _fusion_kernel(nh_ref, radd_ref, wh_ref, o_ref):
    o_ref[...] = (
        jnp.dot(nh_ref[...], wh_ref[...], preferred_element_type=jnp.float32)
        + radd_ref[...]
    )


def fusion_linear_pallas(nodes_h_bf16, rem_add, w_h_bf16):
    """nodes_h_bf16: (M, H) bf16, rem_add: (M, H) f32, w_h: (H, H) bf16 -> (M, H) f32."""
    M, H = nodes_h_bf16.shape
    tm = M
    for t in (512, 256, 128, 64, 32, 16):      # real M-tiling so the DMA pipelines
        if M % t == 0:
            tm = t
            break
    return pl.pallas_call(
        _fusion_kernel,
        out_shape=jax.ShapeDtypeStruct((M, H), jnp.float32),
        grid=(M // tm,),
        in_specs=[
            pl.BlockSpec((tm, H), lambda i: (i, 0)),
            pl.BlockSpec((tm, H), lambda i: (i, 0)),
            pl.BlockSpec((H, H), lambda i: (0, 0)),
        ],
        out_specs=pl.BlockSpec((tm, H), lambda i: (i, 0)),
        compiler_params=pltpu.CompilerParams(dimension_semantics=("parallel",)),
    )(nodes_h_bf16, rem_add, w_h_bf16)


# ---------------------------------------------------------------------------
# fused encoder block (edge-biased MHSA + Add&LN + GELU FFN + Add&LN)
# ---------------------------------------------------------------------------
def _layernorm(x, g, b, eps=1e-5):
    mu = jnp.mean(x, axis=-1, keepdims=True)
    var = jnp.mean((x - mu) * (x - mu), axis=-1, keepdims=True)
    return (x - mu) * jax.lax.rsqrt(var + eps) * g + b


def _gelu(x):
    # TODO(synk): tanh-approximate GELU (torch.nn.GELU defaults to the erf form).
    c = math.sqrt(2.0 / math.pi)
    return 0.5 * x * (1.0 + jnp.tanh(c * (x + 0.044715 * x * x * x)))


def _encoder_block_kernel(h_ref, lbl_ref, mask_ref, ebt_ref,
                          wqkv_ref, bqkv_ref, wo_ref, bo_ref,
                          ln1g_ref, ln1b_ref, w1_ref, b1_ref,
                          w2_ref, b2_ref, ln2g_ref, ln2b_ref,
                          o_ref, *, num_heads, edge_vocab):
    N = h_ref.shape[1]
    H = h_ref.shape[2]
    dh = H // num_heads
    scale = 1.0 / math.sqrt(dh)

    h = h_ref[0]                               # (N, H)  f32 residual stream
    hb = h.astype(jnp.bfloat16)                # bf16 MXU operand
    labels = lbl_ref[0]                        # (N, N)  int32 edge labels
    mask = mask_ref[0]                         # (N, N)  f32 additive mask (node+edge)

    # ---- edge-attention bias for ALL heads from the per-label table --------
    # bias[hd, q, k] = table[labels[q, k], hd]; built with an ev-way select so
    # the (E, N, N) edge-embedding tensor never leaves HBM (only the int labels
    # and a tiny per-layer table are shipped).
    eb = jnp.zeros((num_heads, N, N), dtype=jnp.float32)
    for e in range(edge_vocab):
        onehot_e = (labels == e).astype(jnp.float32)             # (N, N)
        eb = eb + onehot_e[None, :, :] * ebt_ref[e]              # (heads,1,1) bcast

    # ---- Q/K/V projection with heads as a dot_general batch dim ------------
    hb3 = jnp.broadcast_to(hb, (num_heads, N, H))                # hoisted once
    q = jnp.einsum('hnk,hkd->hnd', hb3, wqkv_ref[0],
                   preferred_element_type=jnp.float32) + bqkv_ref[0]
    k = jnp.einsum('hnk,hkd->hnd', hb3, wqkv_ref[1],
                   preferred_element_type=jnp.float32) + bqkv_ref[1]
    v = jnp.einsum('hnk,hkd->hnd', hb3, wqkv_ref[2],
                   preferred_element_type=jnp.float32) + bqkv_ref[2]

    # ---- batched attention (bf16 matmul operands, f32 softmax) -------------
    s = jnp.einsum('hqd,hkd->hqk', q.astype(jnp.bfloat16), k.astype(jnp.bfloat16),
                   preferred_element_type=jnp.float32) * scale
    s = s + eb + mask[None, :, :]
    m = jnp.max(s, axis=-1, keepdims=True)
    p = jnp.exp(s - m)
    l = jnp.sum(p, axis=-1, keepdims=True)
    ctx = jnp.einsum('hqk,hkd->hqd', p.astype(jnp.bfloat16), v.astype(jnp.bfloat16),
                     preferred_element_type=jnp.float32)
    ctx = ctx * pl.reciprocal(l, approx=False)   # exact recip, applied to (N, dh) ctx

    # ---- output projection: heads-batched matmul, summed over heads --------
    outh = jnp.einsum('hnd,hdo->hno', ctx.astype(jnp.bfloat16), wo_ref[...],
                      preferred_element_type=jnp.float32)
    attn = jnp.sum(outh, axis=0) + bo_ref[...]

    # ---- Add & LN -> GELU FFN -> Add & LN (all elementwise kept in f32) ----
    x = _layernorm(h + attn, ln1g_ref[...], ln1b_ref[...])
    f = _gelu(jnp.dot(x.astype(jnp.bfloat16), w1_ref[...],
                      preferred_element_type=jnp.float32) + b1_ref[...])
    f = jnp.dot(f.astype(jnp.bfloat16), w2_ref[...],
                preferred_element_type=jnp.float32) + b2_ref[...]
    o_ref[0] = _layernorm(x + f, ln2g_ref[...], ln2b_ref[...])


def encoder_block_pallas(h, edge_labels, mask_add, prep, num_heads, edge_vocab):
    B, N, H = h.shape
    dh = H // num_heads
    F = prep['w1'].shape[1]
    EV = edge_vocab

    kernel = functools.partial(_encoder_block_kernel,
                               num_heads=num_heads, edge_vocab=edge_vocab)

    def full(shape):
        n = len(shape)
        return pl.BlockSpec(shape, lambda b, _n=n: (0,) * _n)

    in_specs = [
        pl.BlockSpec((1, N, H), lambda b: (b, 0, 0)),      # h (f32 residual)
        pl.BlockSpec((1, N, N), lambda b: (b, 0, 0)),      # edge labels (int32)
        pl.BlockSpec((1, N, N), lambda b: (b, 0, 0)),      # additive mask (f32)
        full((EV, num_heads, 1, 1)),                       # edge-bias table
        full((3, num_heads, H, dh)),                       # head-major Wqkv (bf16)
        full((3, num_heads, 1, dh)),                       # head-major bqkv
        full((num_heads, dh, H)),                          # head-major Wo (bf16)
        full((1, H)),                                      # bo
        full((1, H)), full((1, H)),                        # ln1 g/b
        full((H, F)), full((1, F)),                        # ffn w1 (bf16) / b1
        full((F, H)), full((1, H)),                        # ffn w2 (bf16) / b2
        full((1, H)), full((1, H)),                        # ln2 g/b
    ]
    # TODO(synk): at production N add a query-tile grid axis (flash-style) so a
    # second 'parallel' axis feeds both v7x TensorCores and VMEM stays O(N*tile).
    return pl.pallas_call(
        kernel,
        out_shape=jax.ShapeDtypeStruct((B, N, H), jnp.float32),
        grid=(B,),
        in_specs=in_specs,
        out_specs=pl.BlockSpec((1, N, H), lambda b: (b, 0, 0)),
        compiler_params=pltpu.CompilerParams(
            dimension_semantics=("parallel",),
            vmem_limit_bytes=48 * 1024 * 1024),
    )(h, edge_labels, mask_add,
      prep['ebt'], prep['wqkv_hm'], prep['bqkv_hm'], prep['wo_hm'], prep['bo'],
      prep['ln1_g'], prep['ln1_b'], prep['w1'], prep['b1'],
      prep['w2'], prep['b2'], prep['ln2_g'], prep['ln2_b'])


def _prepare_block(blk, edge_emb, num_heads):
    """Reshape per-layer weights to kernel-friendly head-major / bf16 layouts."""
    H = blk['wqkv'].shape[0]
    dh = H // num_heads
    ev = edge_emb.shape[0]
    # per-edge-label bias table: (ev, heads) — applied unconditionally, the
    # additive edge mask handles non-edges.
    table = edge_emb @ blk['edge_bias_w'] + blk['edge_bias_b']
    return {
        'ebt': table.reshape(ev, num_heads, 1, 1).astype(jnp.float32),
        'wqkv_hm': blk['wqkv'].reshape(H, 3, num_heads, dh)
                              .transpose(1, 2, 0, 3).astype(jnp.bfloat16),
        'bqkv_hm': blk['bqkv'].reshape(3, num_heads, 1, dh).astype(jnp.float32),
        'wo_hm': blk['wo'].reshape(num_heads, dh, H).astype(jnp.bfloat16),
        'bo': blk['bo'],
        'ln1_g': blk['ln1_g'], 'ln1_b': blk['ln1_b'],
        'w1': blk['w1'].astype(jnp.bfloat16), 'b1': blk['b1'],
        'w2': blk['w2'].astype(jnp.bfloat16), 'b2': blk['b2'],
        'ln2_g': blk['ln2_g'], 'ln2_b': blk['ln2_b'],
    }


# ------------------------- parameters & forward pass ----------------------- #

def init_params(key, config):
    H = config['hidden_dim']
    E = config['edge_dim']
    heads = config['num_heads']
    F = config['ffn_dim']
    L = config['num_encoder_layer']
    nv = config['node_vocab']
    ev = config['edge_vocab']
    rem_dim = 2

    keys = jax.random.split(key, 8 + L)

    def nrm(k, shape, scale=0.02):
        return scale * jax.random.normal(k, shape, dtype=jnp.float32)

    params = {
        'node_emb': nrm(keys[0], (nv, H)),
        'edge_emb': nrm(keys[1], (ev, E)),
        'pos_emb': nrm(keys[2], (ev, H)),
        'rem_tag_emb': nrm(keys[3], (3, rem_dim)).at[0].set(0.0),  # padding_idx=0
        'fusion_w_h': nrm(keys[4], (H, H)),
        'fusion_w_r': nrm(keys[5], (rem_dim, H)),
        'fusion_b': jnp.zeros((1, H), jnp.float32),
    }
    blocks = []
    for l in range(L):
        k = jax.random.split(keys[8 + l], 8)
        blocks.append({
            'edge_bias_w': nrm(k[0], (E, heads)),
            'edge_bias_b': jnp.zeros((1, heads), jnp.float32),
            'wqkv': nrm(k[1], (H, 3 * H)),
            'bqkv': jnp.zeros((1, 3 * H), jnp.float32),
            'wo': nrm(k[2], (H, H)), 'bo': jnp.zeros((1, H), jnp.float32),
            'ln1_g': jnp.ones((1, H), jnp.float32),
            'ln1_b': jnp.zeros((1, H), jnp.float32),
            'w1': nrm(k[3], (H, F)), 'b1': jnp.zeros((1, F), jnp.float32),
            'w2': nrm(k[4], (F, H)), 'b2': jnp.zeros((1, H), jnp.float32),
            'ln2_g': jnp.ones((1, H), jnp.float32),
            'ln2_b': jnp.zeros((1, H), jnp.float32),
        })
    params['blocks'] = blocks
    return params


def graph_transformer_encoder(params, inputs, config):
    nodes = inputs['nodes']        # (B, N) int32
    rem_tags = inputs['rem_tags']  # (B, N) int32
    edges = inputs['edges']        # (B, N, N) int32
    B, N = nodes.shape
    H = config['hidden_dim']
    heads = config['num_heads']
    ev = config['edge_vocab']

    # --- embedding lookups (gather glue stays in plain JAX/XLA) ---
    # TODO(synk): position_embedding module not given; mean-pooled edge-label
    # embedding per node is an assumption carried over from the reference port.
    pos_h = jnp.mean(params['pos_emb'][edges], axis=2)    # (B, N, H)
    nodes_h = params['node_emb'][nodes] + pos_h           # (B, N, H)

    # --- rem_tag fusion: rem branch folded to a 3-row table lookup (no K=2 matmul)
    fused_rem = params['rem_tag_emb'] @ params['fusion_w_r'] + params['fusion_b']
    rem_add = fused_rem[rem_tags]                         # (B, N, H)
    h = fusion_linear_pallas(
        nodes_h.reshape(B * N, H).astype(jnp.bfloat16),
        rem_add.reshape(B * N, H).astype(jnp.float32),
        params['fusion_w_h'].astype(jnp.bfloat16),
    ).reshape(B, N, H)

    # --- layer-invariant additive attention mask (masked node keys + non-edges) ---
    nmask = (1.0 - (nodes > 0).astype(jnp.float32)) * -1e16        # (B, N)
    emask = (1.0 - (edges > 0).astype(jnp.float32)) * -1e16        # (B, N, N)
    mask_add = nmask[:, None, :] + emask                           # (B, N, N)
    edge_labels = edges.astype(jnp.int32)                          # (B, N, N)

    for blk in params['blocks']:
        prep = _prepare_block(blk, params['edge_emb'], heads)
        h = encoder_block_pallas(h, edge_labels, mask_add, prep, heads, ev)
    return h


# ---------------------------------- main ----------------------------------- #

if __name__ == "__main__":
    config = dict(hidden_dim=32, num_heads=4, ffn_dim=64, num_encoder_layer=2,
                  node_vocab=20, edge_vocab=6, edge_dim=8)
    B, N = 2, 8

    key = jax.random.PRNGKey(0)
    pkey, nkey, rkey, ekey = jax.random.split(key, 4)
    params = init_params(pkey, config)

    inputs = {
        'nodes': jax.random.randint(nkey, (B, N), 0, config['node_vocab'], dtype=jnp.int32),
        'rem_tags': jax.random.randint(rkey, (B, N), 0, 3, dtype=jnp.int32),
        'edges': jax.random.randint(ekey, (B, N, N), 0, config['edge_vocab'], dtype=jnp.int32),
    }

    out = graph_transformer_encoder(params, inputs, config)
    out = jax.block_until_ready(out)
    assert out.shape == (B, N, config['hidden_dim'])
    assert bool(jnp.all(jnp.isfinite(out)))
    print("KERNEL_OK")
</pallas_src>

<mosaic_0001>
module attributes {stable_mosaic.version = 11 : i64} {
  func.func @_fusion_kernel(%arg0: i32, %arg1: memref<16x32xbf16, #tpu.memory_space<vmem>>, %arg2: memref<16x32xf32, #tpu.memory_space<vmem>>, %arg3: memref<32x32xbf16, #tpu.memory_space<vmem>>, %arg4: memref<16x32xf32, #tpu.memory_space<vmem>>) attributes {dimension_semantics = [#tpu.dimension_semantics<parallel>], iteration_bounds = array<i64: 1>, scalar_prefetch = 0 : i64, scratch_operands = 0 : i64, tpu.core_type = #tpu.core_type<tc>, window_params = [{transform_indices = @transform_0, window_bounds = array<i64: 16, 32>}, {transform_indices = @transform_1, window_bounds = array<i64: 16, 32>}, {pipeline_mode = #tpu.pipeline_mode<synchronous>, transform_indices = @transform_2, window_bounds = array<i64: 32, 32>}, {transform_indices = @transform_3, window_bounds = array<i64: 16, 32>}]} {
    %c0 = arith.constant 0 : index
    %c0_0 = arith.constant 0 : index
    %0 = vector.load %arg1[%c0, %c0_0] : memref<16x32xbf16, #tpu.memory_space<vmem>>, vector<16x32xbf16>
    %c0_1 = arith.constant 0 : index
    %c0_2 = arith.constant 0 : index
    %1 = vector.load %arg3[%c0_1, %c0_2] : memref<32x32xbf16, #tpu.memory_space<vmem>>, vector<32x32xbf16>
    %cst = arith.constant dense<0.000000e+00> : vector<16x32xf32>
    %2 = tpu.matmul %0, %1, %cst {dimension_numbers = #tpu.dot_dimension_numbers<[1], [0], [0], [1], [0, 0, 1, 1], [], []>} : vector<16x32xbf16>, vector<32x32xbf16>, vector<16x32xf32> -> vector<16x32xf32>
    %c0_3 = arith.constant 0 : index
    %c0_4 = arith.constant 0 : index
    %3 = vector.load %arg2[%c0_3, %c0_4] : memref<16x32xf32, #tpu.memory_space<vmem>>, vector<16x32xf32>
    %4 = arith.addf %2, %3 : vector<16x32xf32>
    %c0_5 = arith.constant 0 : index
    %c0_6 = arith.constant 0 : index
    %5 = vector.load %arg4[%c0_5, %c0_6] : memref<16x32xf32, #tpu.memory_space<vmem>>, vector<16x32xf32>
    tpu.vector_store %arg4[%c0_5, %c0_6], %4 {strides = array<i32>} : memref<16x32xf32, #tpu.memory_space<vmem>>, vector<16x32xf32>,
    return
  }
  func.func @transform_0(%arg0: i32) -> (i32, i32) {
    %c0_i32 = arith.constant 0 : i32
    %c0_i32_0 = arith.constant 0 : i32
    return %arg0, %c0_i32 : i32, i32
  }
  func.func @transform_1(%arg0: i32) -> (i32, i32) {
    %c0_i32 = arith.constant 0 : i32
    %c0_i32_0 = arith.constant 0 : i32
    return %arg0, %c0_i32 : i32, i32
  }
  func.func @transform_2(%arg0: i32) -> (i32, i32) {
    %c0_i32 = arith.constant 0 : i32
    %c0_i32_0 = arith.constant 0 : i32
    %c0_i32_1 = arith.constant 0 : i32
    return %c0_i32, %c0_i32_0 : i32, i32
  }
  func.func @transform_3(%arg0: i32) -> (i32, i32) {
    %c0_i32 = arith.constant 0 : i32
    %c0_i32_0 = arith.constant 0 : i32
    return %arg0, %c0_i32 : i32, i32
  }
}

</mosaic_0001>

<llo_original>
// kernel: tpu_custom_call.1
$region0: #{tpu_custom_call.1}
  #allocation0 [shape = 'u32[]', space=smem, size = 0x4, offset = 0x4, fixed_abs, tag = 'smem constant byte address 0x4 - core index']
  #allocation1 [shape = 'u32[144,128]{1,0:T(1,128)}', space=vmem, size = 0x12000, scoped, tag = 'internal scratch']
  %s0 = inlined_call_operand.hbm [shape: bf16[16,32], index: 0, kind: input, shape index: {}]
  %s1 = inlined_call_operand.hbm [shape: f32[16,32], index: 1, kind: input, shape index: {}]
  %s2 = inlined_call_operand.hbm [shape: bf16[32,32], index: 2, kind: input, shape index: {}]
  %s3 = inlined_call_operand.hbm [shape: f32[16,32], index: 3, kind: output, shape index: {}]
  %s4 = sld [smem:[#allocation0]]
  $region34: #{tpu_custom_call.1} parent=0
    _
  %s6 = ssub.s32 1, %s4
  %s7 = scalar_select 0, %s6, %s4
  $region1: #{tpu_custom_call.1} parent=0
    #allocation2 [shape = 'u8[4096]{0}', space=vmem, size = 0x1000, scoped, tag = 'input window, operand 0, single buffered']
    #allocation3 [shape = 's32[1]{0}', space=sflag, size = 0x4, scoped, tag = 'scoped memory for tpu_custom_call.1']
    #allocation4 [shape = 's32[1]{0}', space=sflag, size = 0x4, scoped, tag = 'scoped memory for tpu_custom_call.1']
    #allocation5 [shape = 'u8[8192]{0}', space=vmem, size = 0x2000, scoped, tag = 'input window, operand 1, single buffered']
    #allocation6 [shape = 's32[1]{0}', space=sflag, size = 0x4, scoped, tag = 'scoped memory for tpu_custom_call.1']
    #allocation7 [shape = 'u8[8192]{0}', space=vmem, size = 0x2000, scoped, tag = 'input window, operand 2, single buffered']
    #allocation8 [shape = 'u8[8192]{0}', space=vmem, size = 0x2000, scoped, tag = 'output window, operand 0, single buffered']
    %8 = vsyncpa [#allocation3], 0
    %9 = vsyncpa [#allocation6], 0
    %10 = vsyncpa [#allocation4], 0
    // Predicated region
    $region2: #{tpu_custom_call.1} parent=1 // pred_check
      _
    $region3: #{tpu_custom_call.1} parent=1 // pred_check_branch
      %12 = sbr.rel (0) target = $region5
    $region4: #{tpu_custom_call.1} parent=1 // pred_region
      %s14 = ssub.s32 128, 128
      %15 = vsyncadd [#allocation3], %s14
      %s16 = sshll.u32 [#allocation2], 4
      %s17 = int_to_ptr.vmem [resolvable:$true] %s16
      %22 = dma.hbm_to_vmem [thread:$0]  %s0, 128, %s17, [#allocation3], 64, 64, 4
    $region5: #{tpu_custom_call.1} parent=1 // pred_fallthru
      _
    // Predicated region
    $region6: #{tpu_custom_call.1} parent=1 // pred_check
      _
    $region7: #{tpu_custom_call.1} parent=1 // pred_check_branch
      %24 = sbr.rel (0) target = $region9
    $region8: #{tpu_custom_call.1} parent=1 // pred_region
      %s26 = ssub.s32 256, 256
      %27 = vsyncadd [#allocation6], %s26
      %s28 = sshll.u32 [#allocation5], 4
      %s29 = int_to_ptr.vmem [resolvable:$true] %s28
      %34 = dma.hbm_to_vmem [thread:$0]  %s1, 256, %s29, [#allocation6], 128, 128, 8
    $region9: #{tpu_custom_call.1} parent=1 // pred_fallthru
      _
    // Predicated region
    $region10: #{tpu_custom_call.1} parent=1 // pred_check
      _
    $region11: #{tpu_custom_call.1} parent=1 // pred_check_branch
      %36 = sbr.rel (0) target = $region13
    $region12: #{tpu_custom_call.1} parent=1 // pred_region
      %s38 = ssub.s32 256, 256
      %39 = vsyncadd [#allocation6], %s38
      %s40 = sshll.u32 [#allocation7], 4
      %s41 = int_to_ptr.vmem [resolvable:$true] %s40
      %46 = dma.hbm_to_vmem [thread:$0]  %s2, 256, %s41, [#allocation6], 64, 64, 4
    $region13: #{tpu_custom_call.1} parent=1 // pred_fallthru
      _
    // Predicated region
    $region14: #{tpu_custom_call.1} parent=1 // pred_check
      _
    $region15: #{tpu_custom_call.1} parent=1 // pred_check_branch
      %48 = sbr.rel (0) target = $region17
    $region16: #{tpu_custom_call.1} parent=1 // pred_region
      %49 = dma.done [#allocation3], 128
    $region17: #{tpu_custom_call.1} parent=1 // pred_fallthru
      _
    // Predicated region
    $region18: #{tpu_custom_call.1} parent=1 // pred_check
      _
    $region19: #{tpu_custom_call.1} parent=1 // pred_check_branch
      %51 = sbr.rel (0) target = $region21
    $region20: #{tpu_custom_call.1} parent=1 // pred_region
      %52 = dma.done [#allocation6], 256
    $region21: #{tpu_custom_call.1} parent=1 // pred_fallthru
      _
    // Predicated region
    $region22: #{tpu_custom_call.1} parent=1 // pred_check
      _
    $region23: #{tpu_custom_call.1} parent=1 // pred_check_branch
      %54 = sbr.rel (0) target = $region25
    $region24: #{tpu_custom_call.1} parent=1 // pred_region
      %55 = dma.done [#allocation6], 256
    $region25: #{tpu_custom_call.1} parent=1 // pred_fallthru
      _
    %v57 = vld [vmem:[#allocation2] sm:$0xf]
    %v58 = vld [vmem:[#allocation2 + $0x4] sm:$0xf]
    %v59 = vld [vmem:[#allocation7] sm:$0xf]
    %v60 = vld [vmem:[#allocation7 + $0x4] sm:$0xf]
    %v61 = vld [vmem:[#allocation7 + $0x8] sm:$0xf]
    %v62 = vld [vmem:[#allocation7 + $0xc] sm:$0xf]
    %v63 = vld [vmem:[#allocation5] sm:$0xff]
    %v64 = vld [vmem:[#allocation5 + $0x8] sm:$0xff]
    %v67 = vunpack.c.l.b16 %v57
    %v68 = vunpack.c.l.b16 %v58
    %v69 = vpack.c.b16 %v68, %v67
    %v74 = vunpack.c.l.b16 %v59
    %v75 = vunpack.c.l.b16 %v60
    %v76 = vunpack.c.l.b16 %v61
    %v77 = vunpack.c.l.b16 %v62
    %v78 = vpack.c.b16 %v75, %v74
    %v79 = vpack.c.b16 %v77, %v76
    %vm82 = vcmask 261120
    %v84 = vsel %vm82, %v69, 0
    %86 = vmatprep.subr.bf16.mxu0 0
    %87 = vmatpush1.bf16.msra.mxu0 %v78
    %88 = vmatprep.subr.bf16.mxu0 0
    %89 = vmatpush1.bf16.msra.mxu0 %v79
    %90 = vmatprep.subr.bf16.mxu0 0
    %91 = vmatpush1.bf16.msra.mxu0 0
    %92 = vmatprep.subr.bf16.mxu0 0
    %93 = vmatpush1.bf16.msra.mxu0 0
    %94 = vmatprep.subr.bf16.mxu0 0
    %95 = vmatpush1.bf16.msra.mxu0 0
    %96 = vmatprep.subr.bf16.mxu0 0
    %97 = vmatpush1.bf16.msra.mxu0 0
    %98 = vmatprep.subr.bf16.mxu0 0
    %99 = vmatpush1.bf16.msra.mxu0 0
    %100 = vmatprep.subr.bf16.mxu0 0
    %101 = vmatpush1.bf16.msra.mxu0 0
    %102 = vmatprep.subr.bf16.mxu0 0
    %103 = vmatpush1.bf16.msra.mxu0 0
    %104 = vmatprep.subr.bf16.mxu0 0
    %105 = vmatpush1.bf16.msra.mxu0 0
    %106 = vmatprep.subr.bf16.mxu0 0
    %107 = vmatpush1.bf16.msra.mxu0 0
    %108 = vmatprep.subr.bf16.mxu0 0
    %109 = vmatpush1.bf16.msra.mxu0 0
    %110 = vmatprep.subr.bf16.mxu0 0
    %111 = vmatpush1.bf16.msra.mxu0 0
    %112 = vmatprep.subr.bf16.mxu0 0
    %113 = vmatpush1.bf16.msra.mxu0 0
    %114 = vmatprep.subr.bf16.mxu0 0
    %115 = vmatpush1.bf16.msra.mxu0 0
    %116 = vmatprep.subr.bf16.mxu0 0
    %117 = vmatpush1.bf16.msra.mxu0 0
    %118 = vmatprep.mubr.bf16.mxu0 0
    %119 = vmatmul.mubr.bf16.gmra.mrb[0].mxu0 %v84
    %v120 = vpop.f32.mrb[0].mxu0
    %v121 = vadd.f32 %v63, %v120
    %v122 = vpop.f32.mrb[0].mxu0
    %v123 = vpop.f32.mrb[0].mxu0
    %v124 = vadd.f32 %v64, %v123
    %v125 = vpop.f32.mrb[0].mxu0
    %126 = vdwg.mxu0
    %127 = vst.msk [vmem:[#allocation8] sm:$0xff] %vm82, %v121
    %128 = vst.msk [vmem:[#allocation8 + $0x8] sm:$0xff] %vm82, %v124
    // Predicated region
    $region26: #{tpu_custom_call.1} parent=1 // pred_check
      _
    $region27: #{tpu_custom_call.1} parent=1 // pred_check_branch
      %130 = sbr.rel (0) target = $region29
    $region28: #{tpu_custom_call.1} parent=1 // pred_region
      %s132 = ssub.s32 256, 256
      %133 = vsyncadd [#allocation4], %s132
      %s134 = sshll.u32 [#allocation8], 4
      %s135 = int_to_ptr.vmem [resolvable:$true] %s134
      %140 = dma.vmem_to_hbm [thread:$0]  %s135, 256, %s3, [#allocation4], 128, 128, 8
    $region29: #{tpu_custom_call.1} parent=1 // pred_fallthru
      _
    // Predicated region
    $region30: #{tpu_custom_call.1} parent=1 // pred_check
      _
    $region31: #{tpu_custom_call.1} parent=1 // pred_check_branch
      %142 = sbr.rel (0) target = $region33
    $region32: #{tpu_custom_call.1} parent=1 // pred_region
      %143 = dma.done [#allocation4], 256
    $region33: #{tpu_custom_call.1} parent=1 // pred_fallthru
      _
    %144 = vsyncpa [#allocation3], 1
    %145 = vsyncpa [#allocation6], 1
    %146 = vsyncpa [#allocation4], 1

</llo_original>
